<compile_context>
chip_gen: v5e
topology: v5e:2x2
jax: 0.10.0
libtpu: 0.0.40
codegen_flags: <defaults>
</compile_context>

<pallas_src>
import jax
import jax.numpy as jnp
from jax.experimental import pallas as pl
from jax.experimental.pallas import tpu as pltpu

# ----------------------- sizes (small, synthetic) --------------------------
B = 2            # batch
CIN = 3          # conv input channels
IMG = 16         # input spatial
COUT = 32        # conv output channels == v_dim
STRIDE = 2
OH = OW = IMG // STRIDE
K = OH * OW      # spatial positions per image (64)
R = 6            # encoder.max_role_count (required_indices assumes 6)
E = 32           # verb/role embedding dim
Q = 64           # query_composer output dim
HD = 64          # v_att hidden dim
H = 64           # q_net / v_net output dim (joint repr)
HD2 = 64         # neighbour_att hidden dim
HC = 128         # classifier hidden dim
L = 128          # number of role labels
NUM_VERBS = 10
NUM_ROLES = 12
PATCH = 9 * CIN  # 27 (im2col width)
PATCH_PAD = 32   # 27 real cols + 1 ones col (bakes conv bias) + 4 zero pad
BK = B * K       # 128 folded spatial rows
BR = B * R       # 12 folded role rows

_MASK_VAL = float(jnp.finfo(jnp.float32).min)


# ----------------------------- Pallas kernel -------------------------------
def _fused_kernel(patches_ref, rv_ref, slab32_ref, slab64_ref, w2_ref,
                  misc_ref, out_ref):
    # Single grid step: whole batch folded into matmul rows.
    patches = patches_ref[...]          # [BK, 32]   (col 27 == 1.0 -> conv bias)
    rv = rv_ref[...]                    # [BR, 2E]
    slab32 = slab32_ref[...]            # [32, 160]  = [wvp | wvn | wconv(+bias row)]
    slab64 = slab64_ref[...]            # [64, 448]  = [wqp|wqn | wnp|wcp | w1 | wqc]
    w2 = w2_ref[...]                    # [HC, L]
    misc = misc_ref[...]                # [8, 128]   biases + attention-linear rows

    # -- static slab slices (lane-tile friendly offsets) ---------------------
    wvp = slab32[:, 0:HD]                       # [32, 64]
    wvn = slab32[:, HD:HD + H]                  # [32, 64]
    wconv = slab32[:, HD + H:HD + H + COUT]     # [32, 32]
    wqpn = slab64[:, 0:HD + H]                  # [64, 128]  (wqp | wqn)
    wnpcp = slab64[:, 128:256]                  # [64, 128]  (wnp | wcp)
    w1 = slab64[:, 256:256 + HC]                # [64, 128]
    wqc = slab64[:, 384:384 + Q]                # [64, 64]

    bvp = misc[0:1, 0:HD]
    bvn = misc[0:1, HD:HD + H]
    bqc = misc[1:2, 0:Q]
    bqpn = misc[2:3, :]
    bnpcp = misc[3:4, :]
    b1 = misc[4:5, :]
    b2 = misc[5:6, :]
    wlin = misc[6:7, 0:HD]
    wlN = misc[6:7, HD:HD + HD2]

    # ---- convnet: conv-as-GEMM + ReLU (bias baked via ones column) ---------
    feat = jnp.maximum(
        jnp.dot(patches, wconv, preferred_element_type=jnp.float32), 0.0)    # [BK, C]

    # ---- query_composer (FCNet) --------------------------------------------
    q_emb = jnp.maximum(
        jnp.dot(rv, wqc, preferred_element_type=jnp.float32) + bqc, 0.0)     # [BR, Q]

    # ---- v_att --------------------------------------------------------------
    # image projection computed once over all B*K spatial rows
    v_proj = jnp.maximum(
        jnp.dot(feat, wvp, preferred_element_type=jnp.float32) + bvp, 0.0)   # [BK, HD]
    # fused q-path: [v_att.q_proj | q_net] in a single N=128 matmul
    qf = jnp.maximum(
        jnp.dot(q_emb, wqpn, preferred_element_type=jnp.float32) + bqpn, 0.0)  # [BR, 128]
    q_proj = qf[:, 0:HD]
    q_repr = qf[:, HD:HD + H]

    # logits[r, k] = sum_h v_proj[k,h] * q_proj[r,h] * wlin[h]   (K on lanes)
    # (the v_att output-linear bias is uniform over K -> cancels in softmax)
    scored = q_proj * wlin                                                    # [BR, HD]
    logits = jax.lax.dot_general(scored, v_proj, (((1,), (1,)), ((), ())),
                                 preferred_element_type=jnp.float32)          # [BR, BK]
    # block-diagonal same-batch mask (comparisons only; no vector int div)
    ri = jax.lax.broadcasted_iota(jnp.int32, (BR, BK), 0)
    cj = jax.lax.broadcasted_iota(jnp.int32, (BR, BK), 1)
    same = (ri < R) & (cj < K)
    for b in range(1, B):
        same = same | ((ri >= b * R) & (ri < (b + 1) * R) &
                       (cj >= b * K) & (cj < (b + 1) * K))
    logits = jnp.where(same, logits, _MASK_VAL)
    m = jnp.max(logits, axis=-1, keepdims=True)
    e = jnp.exp(logits - m)                    # masked entries -> exactly 0
    att = e / jnp.sum(e, axis=-1, keepdims=True)
    # v_emb = (att * img).sum(spatial) as an MXU matmul; masked cols are 0 so
    # no cross-batch contribution leaks in.
    v_emb = jnp.dot(att, feat, preferred_element_type=jnp.float32)            # [BR, C]

    # ---- v_net + elementwise fusion with q_net ------------------------------
    v_repr = jnp.maximum(
        jnp.dot(v_emb, wvn, preferred_element_type=jnp.float32) + bvn, 0.0)   # [BR, H]
    roles = q_repr * v_repr                                                   # == all_roles

    # ---- neighbour attention (fused n/c projections, N=128) -----------------
    npc = jnp.maximum(
        jnp.dot(roles, wnpcp, preferred_element_type=jnp.float32) + bnpcp, 0.0)  # [BR, 128]
    n_proj = npc[:, 0:HD2]          # projection of roles acting as neighbours
    c_proj = npc[:, HD2:2 * HD2]    # projection of the current (query) role
    # nlogits[i, j] = linear(n_proj[j] * c_proj[i])  (bias cancels in softmax)
    scored2 = c_proj * wlN
    nlogits = jax.lax.dot_general(scored2, n_proj, (((1,), (1,)), ((), ())),
                                  preferred_element_type=jnp.float32)         # [BR, BR]
    ni = jax.lax.broadcasted_iota(jnp.int32, (BR, BR), 0)
    nj = jax.lax.broadcasted_iota(jnp.int32, (BR, BR), 1)
    nsame = (ni < R) & (nj < R)
    for b in range(1, B):
        nsame = nsame | ((ni >= b * R) & (ni < (b + 1) * R) &
                         (nj >= b * R) & (nj < (b + 1) * R))
    valid = nsame & (ni != nj)      # same batch, exclude the role itself
    nlogits = jnp.where(valid, nlogits, _MASK_VAL)
    m2 = jnp.max(nlogits, axis=-1, keepdims=True)
    e2 = jnp.exp(nlogits - m2)
    w = e2 / jnp.sum(e2, axis=-1, keepdims=True)
    context = jnp.dot(w, roles, preferred_element_type=jnp.float32)           # [BR, H]
    # TODO(synk): `joint` is never defined in the reference forward (dropped
    # line); we use joint = current_role * context as the role/context fusion.
    joint = roles * context

    # ---- classifier: Linear -> ReLU -> (Dropout: eval identity) -> Linear ----
    hid = jnp.maximum(
        jnp.dot(joint, w1, preferred_element_type=jnp.float32) + b1, 0.0)     # [BR, HC]
    out_ref[...] = (jnp.dot(hid, w2, preferred_element_type=jnp.float32)
                    + b2)                                                     # [BR, L]


# ----------------------------- Pallas wrapper ------------------------------
_FLOPS = 2 * (BK * PATCH_PAD * COUT       # conv GEMM
              + BK * COUT * HD            # v_proj
              + BR * (2 * E) * Q          # query composer
              + BR * Q * (HD + H)         # fused q_proj | q_net
              + BR * HD * BK              # attention logits
              + BR * BK * COUT            # att @ feat
              + BR * COUT * H             # v_net
              + BR * H * (2 * HD2)        # fused neighbour projections
              + BR * HD2 * BR             # neighbour logits
              + BR * BR * H               # context
              + BR * H * HC               # classifier hidden
              + BR * HC * L)              # classifier out
_TRANSCENDENTALS = BR * BK + BR * BR      # softmax exps


def _fused_forward(patches, rv, p):
    inputs = (patches, rv, p['slab32'], p['slab64'], p['w2'], p['misc'])
    bytes_accessed = sum(int(x.size) * 4 for x in inputs) + BR * L * 4
    return pl.pallas_call(
        _fused_kernel,
        out_shape=jax.ShapeDtypeStruct((BR, L), jnp.float32),
        grid=(1,),
        in_specs=[pl.BlockSpec(x.shape, lambda i: (0, 0)) for x in inputs],
        out_specs=pl.BlockSpec((BR, L), lambda i: (0, 0)),
        compiler_params=pltpu.CompilerParams(
            dimension_semantics=("arbitrary",)),
        cost_estimate=pl.CostEstimate(flops=_FLOPS,
                                      transcendentals=_TRANSCENDENTALS,
                                      bytes_accessed=bytes_accessed),
    )(*inputs)


# --------------------------------- glue -------------------------------------
def _im2col_3x3_s2(x):  # x: [B, H, W, CIN] -> [B, OH, OW, 9*CIN]
    xp = jnp.pad(x, ((0, 0), (1, 1), (1, 1), (0, 0)))
    cols = []
    for di in range(3):
        for dj in range(3):
            cols.append(xp[:, di:di + 2 * (OH - 1) + 1:2,
                           dj:dj + 2 * (OW - 1) + 1:2, :])
    return jnp.concatenate(cols, axis=-1)


def init_params(key):
    ks = list(jax.random.split(key, 40))

    def w(shape, scale=0.1):
        return (scale * jax.random.normal(ks.pop(), shape)).astype(jnp.float32)

    # ---- raw module weights (weight-norm Linears = effective weights) ------
    wconv = w((PATCH, COUT)); bconv = w((COUT,))     # synthetic 3x3/s2 conv+ReLU
    wqc = w((2 * E, Q)); bqc = w((Q,))               # query_composer FCNet
    wvp = w((COUT, HD)); bvp = w((HD,))              # v_att.v_proj FCNet
    wqp = w((Q, HD)); bqp = w((HD,))                 # v_att.q_proj FCNet
    wlin = w((HD,))                                  # v_att.linear (bias cancels)
    wvn = w((COUT, H)); bvn = w((H,))                # v_net FCNet
    wqn = w((Q, H)); bqn = w((H,))                   # q_net FCNet
    wnp = w((H, HD2)); bnp = w((HD2,))               # neighbour_att.v_proj
    wcp = w((H, HD2)); bcp = w((HD2,))               # neighbour_att.q_proj
    wlN = w((HD2,))                                  # neighbour_att.linear
    w1 = w((H, HC)); b1 = w((HC,))                   # classifier hidden
    w2 = w((HC, L)); b2 = w((L,))                    # classifier out

    # ---- pack slabs (done ONCE here, not per call) --------------------------
    # conv bias baked into an extra contraction row hit by the ones column.
    wconv_b = jnp.zeros((PATCH_PAD, COUT), jnp.float32)
    wconv_b = wconv_b.at[:PATCH].set(wconv).at[PATCH].set(bconv)
    slab32 = jnp.concatenate([wvp, wvn, wconv_b], axis=1)            # [32, 160]
    slab64 = jnp.concatenate([wqp, wqn, wnp, wcp, w1, wqc], axis=1)  # [64, 448]

    def row(*parts):
        v = jnp.concatenate([jnp.reshape(x, (1, -1)) for x in parts], axis=1)
        return jnp.pad(v, ((0, 0), (0, 128 - v.shape[1])))

    misc = jnp.concatenate([
        row(bvp, bvn),        # row 0
        row(bqc),             # row 1
        row(bqp, bqn),        # row 2
        row(bnp, bcp),        # row 3
        row(b1),              # row 4
        row(b2),              # row 5
        row(wlin, wlN),       # row 6
        jnp.zeros((1, 128), jnp.float32)], axis=0)                   # [8, 128]

    return {
        'slab32': slab32, 'slab64': slab64, 'w2': w2, 'misc': misc,
        # embeddings + encoder role table (encoder.get_role_ids_batch)
        'verb_emb': w((NUM_VERBS, E)),
        'role_emb': w((NUM_ROLES, E)),
        'verb2role': jax.random.randint(ks.pop(), (NUM_VERBS, R), 0, NUM_ROLES),
    }


@jax.jit
def forward(params, v_org, gt_verb):
    # convnet front-end glue: NCHW -> NHWC, im2col; col 27 = 1.0 bakes the
    # conv bias into the conv-GEMM weight slab (rows folded to [B*K, 32]).
    x = jnp.transpose(v_org, (0, 2, 3, 1))
    patches = _im2col_3x3_s2(x).reshape(BK, PATCH)
    patches = jnp.concatenate(
        [patches, jnp.ones((BK, 1), jnp.float32),
         jnp.zeros((BK, PATCH_PAD - PATCH - 1), jnp.float32)], axis=1)

    # TODO(synk): embedding gathers / im2col remain XLA glue; they could be
    # folded into the kernel via PrefetchScalarGridSpec (scalar ids) with the
    # tiny 10x32 / 12x32 tables resident in VMEM.
    role_idx = params['verb2role'][gt_verb]                 # [B, R]
    verb_embd = params['verb_emb'][gt_verb]                 # [B, E]
    role_embd = params['role_emb'][role_idx]                # [B, R, E]
    verb_exp = jnp.broadcast_to(verb_embd[:, None, :], (B, R, E))
    rv = jnp.concatenate([verb_exp, role_embd], axis=-1).reshape(BR, 2 * E)

    out = _fused_forward(patches, rv, params)               # [B*R, L]
    return out.reshape(B, R, L)


if __name__ == "__main__":
    key = jax.random.PRNGKey(0)
    kp, kx, kv = jax.random.split(key, 3)
    params = init_params(kp)
    v_org = jax.random.normal(kx, (B, CIN, IMG, IMG), dtype=jnp.float32)
    gt_verb = jax.random.randint(kv, (B,), 0, NUM_VERBS)
    logits = forward(params, v_org, gt_verb)
    jax.block_until_ready(logits)
    assert logits.shape == (B, R, L) and logits.dtype == jnp.float32
    assert bool(jnp.all(jnp.isfinite(logits)))
    print("KERNEL_OK")
</pallas_src>

<mosaic_0001>
module attributes {stable_mosaic.version = 11 : i64} {
  func.func @_fused_kernel(%arg0: i32, %arg1: memref<128x32xf32, #tpu.memory_space<vmem>>, %arg2: memref<12x64xf32, #tpu.memory_space<vmem>>, %arg3: memref<32x160xf32, #tpu.memory_space<vmem>>, %arg4: memref<64x448xf32, #tpu.memory_space<vmem>>, %arg5: memref<128x128xf32, #tpu.memory_space<vmem>>, %arg6: memref<8x128xf32, #tpu.memory_space<vmem>>, %arg7: memref<12x128xf32, #tpu.memory_space<vmem>>) attributes {dimension_semantics = [#tpu.dimension_semantics<arbitrary>], iteration_bounds = array<i64: 1>, scalar_prefetch = 0 : i64, scratch_operands = 0 : i64, tpu.core_type = #tpu.core_type<tc>, window_params = [{pipeline_mode = #tpu.pipeline_mode<synchronous>, transform_indices = @transform_0, window_bounds = array<i64: 128, 32>}, {pipeline_mode = #tpu.pipeline_mode<synchronous>, transform_indices = @transform_1, window_bounds = array<i64: 12, 64>}, {pipeline_mode = #tpu.pipeline_mode<synchronous>, transform_indices = @transform_2, window_bounds = array<i64: 32, 160>}, {pipeline_mode = #tpu.pipeline_mode<synchronous>, transform_indices = @transform_3, window_bounds = array<i64: 64, 448>}, {pipeline_mode = #tpu.pipeline_mode<synchronous>, transform_indices = @transform_4, window_bounds = array<i64: 128, 128>}, {pipeline_mode = #tpu.pipeline_mode<synchronous>, transform_indices = @transform_5, window_bounds = array<i64: 8, 128>}, {pipeline_mode = #tpu.pipeline_mode<synchronous>, transform_indices = @transform_6, window_bounds = array<i64: 12, 128>}]} {
    %c0 = arith.constant 0 : index
    %c0_0 = arith.constant 0 : index
    %0 = vector.load %arg1[%c0, %c0_0] : memref<128x32xf32, #tpu.memory_space<vmem>>, vector<128x32xf32>
    %c0_1 = arith.constant 0 : index
    %c0_2 = arith.constant 0 : index
    %1 = vector.load %arg2[%c0_1, %c0_2] : memref<12x64xf32, #tpu.memory_space<vmem>>, vector<12x64xf32>
    %c0_3 = arith.constant 0 : index
    %c0_4 = arith.constant 0 : index
    %2 = vector.load %arg3[%c0_3, %c0_4] : memref<32x160xf32, #tpu.memory_space<vmem>>, vector<32x160xf32>
    %c0_5 = arith.constant 0 : index
    %c0_6 = arith.constant 0 : index
    %3 = vector.load %arg4[%c0_5, %c0_6] : memref<64x448xf32, #tpu.memory_space<vmem>>, vector<64x448xf32>
    %c0_7 = arith.constant 0 : index
    %c0_8 = arith.constant 0 : index
    %4 = vector.load %arg5[%c0_7, %c0_8] : memref<128x128xf32, #tpu.memory_space<vmem>>, vector<128x128xf32>
    %c0_9 = arith.constant 0 : index
    %c0_10 = arith.constant 0 : index
    %5 = vector.load %arg6[%c0_9, %c0_10] : memref<8x128xf32, #tpu.memory_space<vmem>>, vector<8x128xf32>
    %6 = vector.extract_strided_slice %2 {offsets = [0, 0], sizes = [32, 64], strides = [1, 1]} : vector<32x160xf32> to vector<32x64xf32>
    %7 = vector.extract_strided_slice %2 {offsets = [0, 64], sizes = [32, 64], strides = [1, 1]} : vector<32x160xf32> to vector<32x64xf32>
    %8 = vector.extract_strided_slice %2 {offsets = [0, 128], sizes = [32, 32], strides = [1, 1]} : vector<32x160xf32> to vector<32x32xf32>
    %9 = vector.extract_strided_slice %3 {offsets = [0, 0], sizes = [64, 128], strides = [1, 1]} : vector<64x448xf32> to vector<64x128xf32>
    %10 = vector.extract_strided_slice %3 {offsets = [0, 128], sizes = [64, 128], strides = [1, 1]} : vector<64x448xf32> to vector<64x128xf32>
    %11 = vector.extract_strided_slice %3 {offsets = [0, 256], sizes = [64, 128], strides = [1, 1]} : vector<64x448xf32> to vector<64x128xf32>
    %12 = vector.extract_strided_slice %3 {offsets = [0, 384], sizes = [64, 64], strides = [1, 1]} : vector<64x448xf32> to vector<64x64xf32>
    %13 = vector.extract_strided_slice %5 {offsets = [0, 0], sizes = [1, 64], strides = [1, 1]} : vector<8x128xf32> to vector<1x64xf32>
    %14 = vector.extract_strided_slice %5 {offsets = [0, 64], sizes = [1, 64], strides = [1, 1]} : vector<8x128xf32> to vector<1x64xf32>
    %15 = vector.extract_strided_slice %5 {offsets = [1, 0], sizes = [1, 64], strides = [1, 1]} : vector<8x128xf32> to vector<1x64xf32>
    %16 = vector.extract_strided_slice %5 {offsets = [2, 0], sizes = [1, 128], strides = [1, 1]} : vector<8x128xf32> to vector<1x128xf32>
    %17 = vector.extract_strided_slice %5 {offsets = [3, 0], sizes = [1, 128], strides = [1, 1]} : vector<8x128xf32> to vector<1x128xf32>
    %18 = vector.extract_strided_slice %5 {offsets = [4, 0], sizes = [1, 128], strides = [1, 1]} : vector<8x128xf32> to vector<1x128xf32>
    %19 = vector.extract_strided_slice %5 {offsets = [5, 0], sizes = [1, 128], strides = [1, 1]} : vector<8x128xf32> to vector<1x128xf32>
    %20 = vector.extract_strided_slice %5 {offsets = [6, 0], sizes = [1, 64], strides = [1, 1]} : vector<8x128xf32> to vector<1x64xf32>
    %21 = vector.extract_strided_slice %5 {offsets = [6, 64], sizes = [1, 64], strides = [1, 1]} : vector<8x128xf32> to vector<1x64xf32>
    %cst = arith.constant dense<0.000000e+00> : vector<128x32xf32>
    %22 = tpu.matmul %0, %8, %cst {dimension_numbers = #tpu.dot_dimension_numbers<[1], [0], [0], [1], [0, 0, 1, 1], [], []>} : vector<128x32xf32>, vector<32x32xf32>, vector<128x32xf32> -> vector<128x32xf32>
    %cst_11 = arith.constant 0.000000e+00 : f32
    %23 = vector.broadcast %cst_11 : f32 to vector<128x32xf32>
    %24 = arith.maximumf %22, %23 : vector<128x32xf32>
    %cst_12 = arith.constant dense<0.000000e+00> : vector<12x64xf32>
    %25 = tpu.matmul %1, %12, %cst_12 {dimension_numbers = #tpu.dot_dimension_numbers<[1], [0], [0], [1], [0, 0, 1, 1], [], []>} : vector<12x64xf32>, vector<64x64xf32>, vector<12x64xf32> -> vector<12x64xf32>
    %26 = vector.broadcast %15 : vector<1x64xf32> to vector<12x64xf32>
    %27 = arith.addf %25, %26 : vector<12x64xf32>
    %cst_13 = arith.constant 0.000000e+00 : f32
    %28 = vector.broadcast %cst_13 : f32 to vector<12x64xf32>
    %29 = arith.maximumf %27, %28 : vector<12x64xf32>
    %cst_14 = arith.constant dense<0.000000e+00> : vector<128x64xf32>
    %30 = tpu.matmul %24, %6, %cst_14 {dimension_numbers = #tpu.dot_dimension_numbers<[1], [0], [0], [1], [0, 0, 1, 1], [], []>} : vector<128x32xf32>, vector<32x64xf32>, vector<128x64xf32> -> vector<128x64xf32>
    %31 = vector.broadcast %13 : vector<1x64xf32> to vector<128x64xf32>
    %32 = arith.addf %30, %31 : vector<128x64xf32>
    %cst_15 = arith.constant 0.000000e+00 : f32
    %33 = vector.broadcast %cst_15 : f32 to vector<128x64xf32>
    %34 = arith.maximumf %32, %33 : vector<128x64xf32>
    %cst_16 = arith.constant dense<0.000000e+00> : vector<12x128xf32>
    %35 = tpu.matmul %29, %9, %cst_16 {dimension_numbers = #tpu.dot_dimension_numbers<[1], [0], [0], [1], [0, 0, 1, 1], [], []>} : vector<12x64xf32>, vector<64x128xf32>, vector<12x128xf32> -> vector<12x128xf32>
    %36 = vector.broadcast %16 : vector<1x128xf32> to vector<12x128xf32>
    %37 = arith.addf %35, %36 : vector<12x128xf32>
    %cst_17 = arith.constant 0.000000e+00 : f32
    %38 = vector.broadcast %cst_17 : f32 to vector<12x128xf32>
    %39 = arith.maximumf %37, %38 : vector<12x128xf32>
    %40 = vector.extract_strided_slice %39 {offsets = [0, 0], sizes = [12, 64], strides = [1, 1]} : vector<12x128xf32> to vector<12x64xf32>
    %41 = vector.extract_strided_slice %39 {offsets = [0, 64], sizes = [12, 64], strides = [1, 1]} : vector<12x128xf32> to vector<12x64xf32>
    %42 = vector.broadcast %20 : vector<1x64xf32> to vector<12x64xf32>
    %43 = arith.mulf %40, %42 : vector<12x64xf32>
    %cst_18 = arith.constant dense<0.000000e+00> : vector<12x128xf32>
    %44 = tpu.matmul %43, %34, %cst_18 {dimension_numbers = #tpu.dot_dimension_numbers<[1], [1], [0], [0], [0, 0, 1, 0], [], []>} : vector<12x64xf32>, vector<128x64xf32>, vector<12x128xf32> -> vector<12x128xf32>
    %45 = tpu.iota {dimensions = array<i32: 0>} : vector<12x128xi32>
    %46 = tpu.iota {dimensions = array<i32: 1>} : vector<12x128xi32>
    %c6_i32 = arith.constant 6 : i32
    %47 = vector.broadcast %c6_i32 : i32 to vector<12x128xi32>
    %48 = arith.cmpi slt, %45, %47 : vector<12x128xi32>
    %c64_i32 = arith.constant 64 : i32
    %49 = vector.broadcast %c64_i32 : i32 to vector<12x128xi32>
    %50 = arith.cmpi slt, %46, %49 : vector<12x128xi32>
    %51 = arith.andi %48, %50 : vector<12x128xi1>
    %c6_i32_19 = arith.constant 6 : i32
    %52 = vector.broadcast %c6_i32_19 : i32 to vector<12x128xi32>
    %53 = arith.cmpi sge, %45, %52 : vector<12x128xi32>
    %c12_i32 = arith.constant 12 : i32
    %54 = vector.broadcast %c12_i32 : i32 to vector<12x128xi32>
    %55 = arith.cmpi slt, %45, %54 : vector<12x128xi32>
    %56 = arith.andi %53, %55 : vector<12x128xi1>
    %c64_i32_20 = arith.constant 64 : i32
    %57 = vector.broadcast %c64_i32_20 : i32 to vector<12x128xi32>
    %58 = arith.cmpi sge, %46, %57 : vector<12x128xi32>
    %59 = arith.andi %56, %58 : vector<12x128xi1>
    %c128_i32 = arith.constant 128 : i32
    %60 = vector.broadcast %c128_i32 : i32 to vector<12x128xi32>
    %61 = arith.cmpi slt, %46, %60 : vector<12x128xi32>
    %62 = arith.andi %59, %61 : vector<12x128xi1>
    %63 = arith.ori %51, %62 : vector<12x128xi1>
    %cst_21 = arith.constant -3.40282347E+38 : f32
    %64 = vector.broadcast %cst_21 : f32 to vector<12x128xf32>
    %65 = arith.select %63, %44, %64 : vector<12x128xi1>, vector<12x128xf32>
    %cst_22 = arith.constant dense<0xFF800000> : vector<12xf32>
    %66 = vector.multi_reduction <maximumf>, %65, %cst_22 [1] : vector<12x128xf32> to vector<12xf32>
    %67 = vector.shape_cast %66 : vector<12xf32> to vector<12x1xf32>
    %68 = vector.broadcast %67 : vector<12x1xf32> to vector<12x128xf32>
    %69 = arith.subf %65, %68 : vector<12x128xf32>
    %70 = math.exp %69 : vector<12x128xf32>
    %cst_23 = arith.constant dense<0.000000e+00> : vector<12xf32>
    %71 = vector.multi_reduction <add>, %70, %cst_23 [1] : vector<12x128xf32> to vector<12xf32>
    %72 = vector.shape_cast %71 : vector<12xf32> to vector<12x1xf32>
    %73 = vector.broadcast %72 : vector<12x1xf32> to vector<12x128xf32>
    %74 = arith.divf %70, %73 : vector<12x128xf32>
    %cst_24 = arith.constant dense<0.000000e+00> : vector<12x32xf32>
    %75 = tpu.matmul %74, %24, %cst_24 {dimension_numbers = #tpu.dot_dimension_numbers<[1], [0], [0], [1], [0, 0, 1, 1], [], []>} : vector<12x128xf32>, vector<128x32xf32>, vector<12x32xf32> -> vector<12x32xf32>
    %cst_25 = arith.constant dense<0.000000e+00> : vector<12x64xf32>
    %76 = tpu.matmul %75, %7, %cst_25 {dimension_numbers = #tpu.dot_dimension_numbers<[1], [0], [0], [1], [0, 0, 1, 1], [], []>} : vector<12x32xf32>, vector<32x64xf32>, vector<12x64xf32> -> vector<12x64xf32>
    %77 = vector.broadcast %14 : vector<1x64xf32> to vector<12x64xf32>
    %78 = arith.addf %76, %77 : vector<12x64xf32>
    %cst_26 = arith.constant 0.000000e+00 : f32
    %79 = vector.broadcast %cst_26 : f32 to vector<12x64xf32>
    %80 = arith.maximumf %78, %79 : vector<12x64xf32>
    %81 = arith.mulf %41, %80 : vector<12x64xf32>
    %cst_27 = arith.constant dense<0.000000e+00> : vector<12x128xf32>
    %82 = tpu.matmul %81, %10, %cst_27 {dimension_numbers = #tpu.dot_dimension_numbers<[1], [0], [0], [1], [0, 0, 1, 1], [], []>} : vector<12x64xf32>, vector<64x128xf32>, vector<12x128xf32> -> vector<12x128xf32>
    %83 = vector.broadcast %17 : vector<1x128xf32> to vector<12x128xf32>
    %84 = arith.addf %82, %83 : vector<12x128xf32>
    %cst_28 = arith.constant 0.000000e+00 : f32
    %85 = vector.broadcast %cst_28 : f32 to vector<12x128xf32>
    %86 = arith.maximumf %84, %85 : vector<12x128xf32>
    %87 = vector.extract_strided_slice %86 {offsets = [0, 0], sizes = [12, 64], strides = [1, 1]} : vector<12x128xf32> to vector<12x64xf32>
    %88 = vector.extract_strided_slice %86 {offsets = [0, 64], sizes = [12, 64], strides = [1, 1]} : vector<12x128xf32> to vector<12x64xf32>
    %89 = vector.broadcast %21 : vector<1x64xf32> to vector<12x64xf32>
    %90 = arith.mulf %88, %89 : vector<12x64xf32>
    %cst_29 = arith.constant dense<0.000000e+00> : vector<12x12xf32>
    %91 = tpu.matmul %90, %87, %cst_29 {dimension_numbers = #tpu.dot_dimension_numbers<[1], [1], [0], [0], [0, 0, 1, 0], [], []>} : vector<12x64xf32>, vector<12x64xf32>, vector<12x12xf32> -> vector<12x12xf32>
    %92 = tpu.iota {dimensions = array<i32: 0>} : vector<12x12xi32>
    %93 = tpu.iota {dimensions = array<i32: 1>} : vector<12x12xi32>
    %c6_i32_30 = arith.constant 6 : i32
    %94 = vector.broadcast %c6_i32_30 : i32 to vector<12x12xi32>
    %95 = arith.cmpi slt, %92, %94 : vector<12x12xi32>
    %c6_i32_31 = arith.constant 6 : i32
    %96 = vector.broadcast %c6_i32_31 : i32 to vector<12x12xi32>
    %97 = arith.cmpi slt, %93, %96 : vector<12x12xi32>
    %98 = arith.andi %95, %97 : vector<12x12xi1>
    %c6_i32_32 = arith.constant 6 : i32
    %99 = vector.broadcast %c6_i32_32 : i32 to vector<12x12xi32>
    %100 = arith.cmpi sge, %92, %99 : vector<12x12xi32>
    %c12_i32_33 = arith.constant 12 : i32
    %101 = vector.broadcast %c12_i32_33 : i32 to vector<12x12xi32>
    %102 = arith.cmpi slt, %92, %101 : vector<12x12xi32>
    %103 = arith.andi %100, %102 : vector<12x12xi1>
    %c6_i32_34 = arith.constant 6 : i32
    %104 = vector.broadcast %c6_i32_34 : i32 to vector<12x12xi32>
    %105 = arith.cmpi sge, %93, %104 : vector<12x12xi32>
    %106 = arith.andi %103, %105 : vector<12x12xi1>
    %c12_i32_35 = arith.constant 12 : i32
    %107 = vector.broadcast %c12_i32_35 : i32 to vector<12x12xi32>
    %108 = arith.cmpi slt, %93, %107 : vector<12x12xi32>
    %109 = arith.andi %106, %108 : vector<12x12xi1>
    %110 = arith.ori %98, %109 : vector<12x12xi1>
    %111 = arith.cmpi ne, %92, %93 : vector<12x12xi32>
    %112 = arith.andi %110, %111 : vector<12x12xi1>
    %cst_36 = arith.constant -3.40282347E+38 : f32
    %113 = vector.broadcast %cst_36 : f32 to vector<12x12xf32>
    %114 = arith.select %112, %91, %113 : vector<12x12xi1>, vector<12x12xf32>
    %cst_37 = arith.constant dense<0xFF800000> : vector<12xf32>
    %115 = vector.multi_reduction <maximumf>, %114, %cst_37 [1] : vector<12x12xf32> to vector<12xf32>
    %116 = vector.shape_cast %115 : vector<12xf32> to vector<12x1xf32>
    %117 = vector.broadcast %116 : vector<12x1xf32> to vector<12x12xf32>
    %118 = arith.subf %114, %117 : vector<12x12xf32>
    %119 = math.exp %118 : vector<12x12xf32>
    %cst_38 = arith.constant dense<0.000000e+00> : vector<12xf32>
    %120 = vector.multi_reduction <add>, %119, %cst_38 [1] : vector<12x12xf32> to vector<12xf32>
    %121 = vector.shape_cast %120 : vector<12xf32> to vector<12x1xf32>
    %122 = vector.broadcast %121 : vector<12x1xf32> to vector<12x12xf32>
    %123 = arith.divf %119, %122 : vector<12x12xf32>
    %cst_39 = arith.constant dense<0.000000e+00> : vector<12x64xf32>
    %124 = tpu.matmul %123, %81, %cst_39 {dimension_numbers = #tpu.dot_dimension_numbers<[1], [0], [0], [1], [0, 0, 1, 1], [], []>} : vector<12x12xf32>, vector<12x64xf32>, vector<12x64xf32> -> vector<12x64xf32>
    %125 = arith.mulf %81, %124 : vector<12x64xf32>
    %cst_40 = arith.constant dense<0.000000e+00> : vector<12x128xf32>
    %126 = tpu.matmul %125, %11, %cst_40 {dimension_numbers = #tpu.dot_dimension_numbers<[1], [0], [0], [1], [0, 0, 1, 1], [], []>} : vector<12x64xf32>, vector<64x128xf32>, vector<12x128xf32> -> vector<12x128xf32>
    %127 = vector.broadcast %18 : vector<1x128xf32> to vector<12x128xf32>
    %128 = arith.addf %126, %127 : vector<12x128xf32>
    %cst_41 = arith.constant 0.000000e+00 : f32
    %129 = vector.broadcast %cst_41 : f32 to vector<12x128xf32>
    %130 = arith.maximumf %128, %129 : vector<12x128xf32>
    %cst_42 = arith.constant dense<0.000000e+00> : vector<12x128xf32>
    %131 = tpu.matmul %130, %4, %cst_42 {dimension_numbers = #tpu.dot_dimension_numbers<[1], [0], [0], [1], [0, 0, 1, 1], [], []>} : vector<12x128xf32>, vector<128x128xf32>, vector<12x128xf32> -> vector<12x128xf32>
    %132 = vector.broadcast %19 : vector<1x128xf32> to vector<12x128xf32>
    %133 = arith.addf %131, %132 : vector<12x128xf32>
    %c0_43 = arith.constant 0 : index
    %c0_44 = arith.constant 0 : index
    %134 = vector.load %arg7[%c0_43, %c0_44] : memref<12x128xf32, #tpu.memory_space<vmem>>, vector<12x128xf32>
    tpu.vector_store %arg7[%c0_43, %c0_44], %133 {strides = array<i32>} : memref<12x128xf32, #tpu.memory_space<vmem>>, vector<12x128xf32>,
    return
  }
  func.func @transform_0(%arg0: i32) -> (i32, i32) {
    %c0_i32 = arith.constant 0 : i32
    %c0_i32_0 = arith.constant 0 : i32
    %c0_i32_1 = arith.constant 0 : i32
    return %c0_i32, %c0_i32_0 : i32, i32
  }
  func.func @transform_1(%arg0: i32) -> (i32, i32) {
    %c0_i32 = arith.constant 0 : i32
    %c0_i32_0 = arith.constant 0 : i32
    %c0_i32_1 = arith.constant 0 : i32
    return %c0_i32, %c0_i32_0 : i32, i32
  }
  func.func @transform_2(%arg0: i32) -> (i32, i32) {
    %c0_i32 = arith.constant 0 : i32
    %c0_i32_0 = arith.constant 0 : i32
    %c0_i32_1 = arith.constant 0 : i32
    return %c0_i32, %c0_i32_0 : i32, i32
  }
  func.func @transform_3(%arg0: i32) -> (i32, i32) {
    %c0_i32 = arith.constant 0 : i32
    %c0_i32_0 = arith.constant 0 : i32
    %c0_i32_1 = arith.constant 0 : i32
    return %c0_i32, %c0_i32_0 : i32, i32
  }
  func.func @transform_4(%arg0: i32) -> (i32, i32) {
    %c0_i32 = arith.constant 0 : i32
    %c0_i32_0 = arith.constant 0 : i32
    %c0_i32_1 = arith.constant 0 : i32
    return %c0_i32, %c0_i32_0 : i32, i32
  }
  func.func @transform_5(%arg0: i32) -> (i32, i32) {
    %c0_i32 = arith.constant 0 : i32
    %c0_i32_0 = arith.constant 0 : i32
    %c0_i32_1 = arith.constant 0 : i32
    return %c0_i32, %c0_i32_0 : i32, i32
  }
  func.func @transform_6(%arg0: i32) -> (i32, i32) {
    %c0_i32 = arith.constant 0 : i32
    %c0_i32_0 = arith.constant 0 : i32
    %c0_i32_1 = arith.constant 0 : i32
    return %c0_i32, %c0_i32_0 : i32, i32
  }
}

</mosaic_0001>

<llo_original>
// kernel: forward.1
$region0: #{forward.1}
  #allocation0 [shape = 'u32[]', space=smem, size = 0x4, offset = 0x4, fixed_abs, tag = 'smem constant byte address 0x4 - core index']
  #allocation1 [shape = 'u32[72,128]{1,0:T(1,128)}', space=vmem, size = 0x9000, scoped, tag = 'internal scratch']
  %s0 = inlined_call_operand.vmem [shape: f32[128,32], index: 0, kind: input, shape index: {}]
  %s1 = inlined_call_operand.vmem [shape: f32[12,64], index: 1, kind: input, shape index: {}]
  %s2 = inlined_call_operand.vmem [shape: f32[32,160], index: 2, kind: input, shape index: {}]
  %s3 = inlined_call_operand.vmem [shape: f32[64,448], index: 3, kind: input, shape index: {}]
  %s4 = inlined_call_operand.vmem [shape: f32[128,128], index: 4, kind: input, shape index: {}]
  %s5 = inlined_call_operand.vmem [shape: f32[8,128], index: 5, kind: input, shape index: {}]
  %s6 = inlined_call_operand.vmem [shape: f32[12,128], index: 6, kind: output, shape index: {}]
  %s7 = sld [smem:[#allocation0]]
  $region34: #{forward.1} parent=0
    _
  %s9 = ssub.s32 1, %s7
  %s10 = scalar_select 0, %s9, %s7
  // Predicated region
  $region2: #{forward.1} parent=0 // pred_check
    _
  $region3: #{forward.1} parent=0 // pred_check_branch
    %12 = sbr.rel (0) target = $region5
  $region4: #{forward.1} parent=0 // pred_region
    _
  $region5: #{forward.1} parent=0 // pred_fallthru
    _
  // Predicated region
  $region6: #{forward.1} parent=0 // pred_check
    _
  $region7: #{forward.1} parent=0 // pred_check_branch
    %14 = sbr.rel (0) target = $region9
  $region8: #{forward.1} parent=0 // pred_region
    _
  $region9: #{forward.1} parent=0 // pred_fallthru
    _
  // Predicated region
  $region10: #{forward.1} parent=0 // pred_check
    _
  $region11: #{forward.1} parent=0 // pred_check_branch
    %16 = sbr.rel (0) target = $region13
  $region12: #{forward.1} parent=0 // pred_region
    _
  $region13: #{forward.1} parent=0 // pred_fallthru
    _
  // Predicated region
  $region14: #{forward.1} parent=0 // pred_check
    _
  $region15: #{forward.1} parent=0 // pred_check_branch
    %18 = sbr.rel (0) target = $region17
  $region16: #{forward.1} parent=0 // pred_region
    _
  $region17: #{forward.1} parent=0 // pred_fallthru
    _
  // Predicated region
  $region18: #{forward.1} parent=0 // pred_check
    _
  $region19: #{forward.1} parent=0 // pred_check_branch
    %20 = sbr.rel (0) target = $region21
  $region20: #{forward.1} parent=0 // pred_region
    _
  $region21: #{forward.1} parent=0 // pred_fallthru
    _
  // Predicated region
  $region22: #{forward.1} parent=0 // pred_check
    _
  $region23: #{forward.1} parent=0 // pred_check_branch
    %22 = sbr.rel (0) target = $region25
  $region24: #{forward.1} parent=0 // pred_region
    _
  $region25: #{forward.1} parent=0 // pred_fallthru
    _
  %v23 = vld [vmem:[%s0] sm:$0xff]
  %v24 = vld [vmem:[%s0 + $0x8] sm:$0xff]
  %v25 = vld [vmem:[%s0 + $0x10] sm:$0xff]
  %v26 = vld [vmem:[%s0 + $0x18] sm:$0xff]
  %v27 = vld [vmem:[%s0 + $0x20] sm:$0xff]
  %v28 = vld [vmem:[%s0 + $0x28] sm:$0xff]
  %v29 = vld [vmem:[%s0 + $0x30] sm:$0xff]
  %v30 = vld [vmem:[%s0 + $0x38] sm:$0xff]
  %v31 = vld [vmem:[%s0 + $0x40] sm:$0xff]
  %v32 = vld [vmem:[%s0 + $0x48] sm:$0xff]
  %v33 = vld [vmem:[%s0 + $0x50] sm:$0xff]
  %v34 = vld [vmem:[%s0 + $0x58] sm:$0xff]
  %v35 = vld [vmem:[%s0 + $0x60] sm:$0xff]
  %v36 = vld [vmem:[%s0 + $0x68] sm:$0xff]
  %v37 = vld [vmem:[%s0 + $0x70] sm:$0xff]
  %v38 = vld [vmem:[%s0 + $0x78] sm:$0xff]
  %v39 = vld [vmem:[%s1] sm:$0xff]
  %v40 = vld [vmem:[%s1 + $0x8] sm:$0xf]
  %v41 = vld [vmem:[%s2] sm:$0xff]
  %v42 = vld [vmem:[%s2 + $0x8] sm:$0xff]
  %v43 = vld [vmem:[%s2 + $0x10] sm:$0xff]
  %v44 = vld [vmem:[%s2 + $0x18] sm:$0xff]
  %v45 = vld [vmem:[%s2 + $0x20] sm:$0xff]
  %v46 = vld [vmem:[%s2 + $0x28] sm:$0xff]
  %v47 = vld [vmem:[%s2 + $0x30] sm:$0xff]
  %v48 = vld [vmem:[%s2 + $0x38] sm:$0xff]
  %v49 = vld [vmem:[%s3] sm:$0xff]
  %v50 = vld [vmem:[%s3 + $0x8] sm:$0xff]
  %v51 = vld [vmem:[%s3 + $0x10] sm:$0xff]
  %v52 = vld [vmem:[%s3 + $0x18] sm:$0xff]
  %v53 = vld [vmem:[%s3 + $0x20] sm:$0xff]
  %v54 = vld [vmem:[%s3 + $0x28] sm:$0xff]
  %v55 = vld [vmem:[%s3 + $0x30] sm:$0xff]
  %v56 = vld [vmem:[%s3 + $0x38] sm:$0xff]
  %v57 = vld [vmem:[%s3 + $0x40] sm:$0xff]
  %v58 = vld [vmem:[%s3 + $0x48] sm:$0xff]
  %v59 = vld [vmem:[%s3 + $0x50] sm:$0xff]
  %v60 = vld [vmem:[%s3 + $0x58] sm:$0xff]
  %v61 = vld [vmem:[%s3 + $0x60] sm:$0xff]
  %v62 = vld [vmem:[%s3 + $0x68] sm:$0xff]
  %v63 = vld [vmem:[%s3 + $0x70] sm:$0xff]
  %v64 = vld [vmem:[%s3 + $0x78] sm:$0xff]
  %v65 = vld [vmem:[%s3 + $0x80] sm:$0xff]
  %v66 = vld [vmem:[%s3 + $0x88] sm:$0xff]
  %v67 = vld [vmem:[%s3 + $0x90] sm:$0xff]
  %v68 = vld [vmem:[%s3 + $0x98] sm:$0xff]
  %v69 = vld [vmem:[%s3 + $0xa0] sm:$0xff]
  %v70 = vld [vmem:[%s3 + $0xa8] sm:$0xff]
  %v71 = vld [vmem:[%s3 + $0xb0] sm:$0xff]
  %v72 = vld [vmem:[%s3 + $0xb8] sm:$0xff]
  %v73 = vld [vmem:[%s3 + $0xc0] sm:$0xff]
  %v74 = vld [vmem:[%s3 + $0xc8] sm:$0xff]
  %v75 = vld [vmem:[%s3 + $0xd0] sm:$0xff]
  %v76 = vld [vmem:[%s3 + $0xd8] sm:$0xff]
  %v77 = vld [vmem:[%s3 + $0xe0] sm:$0xff]
  %v78 = vld [vmem:[%s3 + $0xe8] sm:$0xff]
  %v79 = vld [vmem:[%s3 + $0xf0] sm:$0xff]
  %v80 = vld [vmem:[%s3 + $0xf8] sm:$0xff]
  %v81 = vld [vmem:[%s4] sm:$0xff]
  %v82 = vld [vmem:[%s4 + $0x8] sm:$0xff]
  %v83 = vld [vmem:[%s4 + $0x10] sm:$0xff]
  %v84 = vld [vmem:[%s4 + $0x18] sm:$0xff]
  %v85 = vld [vmem:[%s4 + $0x20] sm:$0xff]
  %v86 = vld [vmem:[%s4 + $0x28] sm:$0xff]
  %v87 = vld [vmem:[%s4 + $0x30] sm:$0xff]
  %v88 = vld [vmem:[%s4 + $0x38] sm:$0xff]
  %v89 = vld [vmem:[%s4 + $0x40] sm:$0xff]
  %v90 = vld [vmem:[%s4 + $0x48] sm:$0xff]
  %v91 = vld [vmem:[%s4 + $0x50] sm:$0xff]
  %v92 = vld [vmem:[%s4 + $0x58] sm:$0xff]
  %v93 = vld [vmem:[%s4 + $0x60] sm:$0xff]
  %v94 = vld [vmem:[%s4 + $0x68] sm:$0xff]
  %v95 = vld [vmem:[%s4 + $0x70] sm:$0xff]
  %v96 = vld [vmem:[%s4 + $0x78] sm:$0xff]
  %v97 = vld [vmem:[%s5] sm:$0xff]
  %vm98 = vcmask 261120
  %v100 = vsel %vm98, %v23, 0
  %v103 = vsel %vm98, %v24, 0
  %v106 = vsel %vm98, %v25, 0
  %v109 = vsel %vm98, %v26, 0
  %v112 = vsel %vm98, %v27, 0
  %v115 = vsel %vm98, %v28, 0
  %v118 = vsel %vm98, %v29, 0
  %v121 = vsel %vm98, %v30, 0
  %v124 = vsel %vm98, %v31, 0
  %v127 = vsel %vm98, %v32, 0
  %v130 = vsel %vm98, %v33, 0
  %v133 = vsel %vm98, %v34, 0
  %v136 = vsel %vm98, %v35, 0
  %v139 = vsel %vm98, %v36, 0
  %v142 = vsel %vm98, %v37, 0
  %v145 = vsel %vm98, %v38, 0
  %147 = vmatpush.msra.mxu0 0.0
  %148 = vmatpush.msra.mxu0 0.0
  %149 = vmatpush.msra.mxu0 0.0
  %150 = vmatpush.msra.mxu0 0.0
  %151 = vmatpush.msra.mxu0 0.0
  %152 = vmatpush.msra.mxu0 0.0
  %153 = vmatpush.msra.mxu0 0.0
  %154 = vmatpush.msra.mxu0 0.0
  %155 = vmatpush.msra.mxu0 0.0
  %156 = vmatpush.msra.mxu0 0.0
  %157 = vmatpush.msra.mxu0 0.0
  %158 = vmatpush.msra.mxu0 0.0
  %159 = vmatpush.msra.mxu0 %v48
  %160 = vmatpush.msra.mxu0 %v46
  %161 = vmatpush.msra.mxu0 %v44
  %162 = vmatpush.msra.mxu0 %v42
  %163 = vmatmul.f32.gmra.mxu0 %v100
  %v164 = vpop.f32.mrf.mxu0
  %v165 = vadd.f32 0.0, %v164
  %166 = vmatmul.f32.gmra.mxu0 %v103
  %v167 = vpop.f32.mrf.mxu0
  %v168 = vadd.f32 0.0, %v167
  %169 = vmatmul.f32.gmra.mxu0 %v106
  %v170 = vpop.f32.mrf.mxu0
  %v171 = vadd.f32 0.0, %v170
  %172 = vmatmul.f32.gmra.mxu0 %v109
  %v173 = vpop.f32.mrf.mxu0
  %v174 = vadd.f32 0.0, %v173
  %175 = vmatmul.f32.gmra.mxu0 %v112
  %v176 = vpop.f32.mrf.mxu0
  %v177 = vadd.f32 0.0, %v176
  %178 = vmatmul.f32.gmra.mxu0 %v115
  %v179 = vpop.f32.mrf.mxu0
  %v180 = vadd.f32 0.0, %v179
  %181 = vmatmul.f32.gmra.mxu0 %v118
  %v182 = vpop.f32.mrf.mxu0
  %v183 = vadd.f32 0.0, %v182
  %184 = vmatmul.f32.gmra.mxu0 %v121
  %v185 = vpop.f32.mrf.mxu0
  %v186 = vadd.f32 0.0, %v185
  %187 = vmatmul.f32.gmra.mxu0 %v124
  %v188 = vpop.f32.mrf.mxu0
  %v189 = vadd.f32 0.0, %v188
  %190 = vmatmul.f32.gmra.mxu0 %v127
  %v191 = vpop.f32.mrf.mxu0
  %v192 = vadd.f32 0.0, %v191
  %193 = vmatmul.f32.gmra.mxu0 %v130
  %v194 = vpop.f32.mrf.mxu0
  %v195 = vadd.f32 0.0, %v194
  %196 = vmatmul.f32.gmra.mxu0 %v133
  %v197 = vpop.f32.mrf.mxu0
  %v198 = vadd.f32 0.0, %v197
  %199 = vmatmul.f32.gmra.mxu0 %v136
  %v200 = vpop.f32.mrf.mxu0
  %v201 = vadd.f32 0.0, %v200
  %202 = vmatmul.f32.gmra.mxu0 %v139
  %v203 = vpop.f32.mrf.mxu0
  %v204 = vadd.f32 0.0, %v203
  %205 = vmatmul.f32.gmra.mxu0 %v142
  %v206 = vpop.f32.mrf.mxu0
  %v207 = vadd.f32 0.0, %v206
  %208 = vmatmul.f32.gmra.mxu0 %v145
  %v209 = vpop.f32.mrf.mxu0
  %v210 = vadd.f32 0.0, %v209
  %211 = vdwg.mxu0
  %v212 = vmax.f32 %v165, 0.0
  %v213 = vmax.f32 %v168, 0.0
  %v214 = vmax.f32 %v171, 0.0
  %v215 = vmax.f32 %v174, 0.0
  %v216 = vmax.f32 %v177, 0.0
  %v217 = vmax.f32 %v180, 0.0
  %v218 = vmax.f32 %v183, 0.0
  %v219 = vmax.f32 %v186, 0.0
  %v220 = vmax.f32 %v189, 0.0
  %v221 = vmax.f32 %v192, 0.0
  %v222 = vmax.f32 %v195, 0.0
  %v223 = vmax.f32 %v198, 0.0
  %v224 = vmax.f32 %v201, 0.0
  %v225 = vmax.f32 %v204, 0.0
  %v226 = vmax.f32 %v207, 0.0
  %v227 = vmax.f32 %v210, 0.0
  %v228 = vperm.slane %v97, 1
  %vm229 = vcmask 523264
  %v231 = vsel %vm229, %v39, 0
  %v234 = vsel %vm229, %v40, 0
  %236 = vmatpush.msra.mxu0 0.0
  %237 = vmatpush.msra.mxu0 0.0
  %238 = vmatpush.msra.mxu0 0.0
  %239 = vmatpush.msra.mxu0 0.0
  %240 = vmatpush.msra.mxu0 0.0
  %241 = vmatpush.msra.mxu0 0.0
  %242 = vmatpush.msra.mxu0 0.0
  %243 = vmatpush.msra.mxu0 0.0
  %244 = vmatpush.msra.mxu0 %v80
  %245 = vmatpush.msra.mxu0 %v76
  %246 = vmatpush.msra.mxu0 %v72
  %247 = vmatpush.msra.mxu0 %v68
  %248 = vmatpush.msra.mxu0 %v64
  %249 = vmatpush.msra.mxu0 %v60
  %250 = vmatpush.msra.mxu0 %v56
  %251 = vmatpush.msra.mxu0 %v52
  %252 = vmatmul.f32.gmra.mxu0 %v231
  %v253 = vpop.f32.mrf.mxu0
  %v254 = vadd.f32 %v228, %v253
  %255 = vmatmul.f32.gmra.mxu0 %v234
  %v256 = vpop.f32.mrf.mxu0
  %v257 = vadd.f32 %v228, %v256
  %258 = vdwg.mxu0
  %v259 = vmax.f32 %v254, 0.0
  %v260 = vmax.f32 %v257, 0.0
  %v261 = vperm.slane %v97, 0
  %v263 = vsel %vm98, %v212, 0
  %v266 = vsel %vm98, %v213, 0
  %v269 = vsel %vm98, %v214, 0
  %v272 = vsel %vm98, %v215, 0
  %v275 = vsel %vm98, %v216, 0
  %v278 = vsel %vm98, %v217, 0
  %v281 = vsel %vm98, %v218, 0
  %v284 = vsel %vm98, %v219, 0
  %v287 = vsel %vm98, %v220, 0
  %v290 = vsel %vm98, %v221, 0
  %v293 = vsel %vm98, %v222, 0
  %v296 = vsel %vm98, %v223, 0
  %v299 = vsel %vm98, %v224, 0
  %v302 = vsel %vm98, %v225, 0
  %v305 = vsel %vm98, %v226, 0
  %v308 = vsel %vm98, %v227, 0
  %310 = vmatpush.msra.mxu0 0.0
  %311 = vmatpush.msra.mxu0 0.0
  %312 = vmatpush.msra.mxu0 0.0
  %313 = vmatpush.msra.mxu0 0.0
  %314 = vmatpush.msra.mxu0 0.0
  %315 = vmatpush.msra.mxu0 0.0
  %316 = vmatpush.msra.mxu0 0.0
  %317 = vmatpush.msra.mxu0 0.0
  %318 = vmatpush.msra.mxu0 0.0
  %319 = vmatpush.msra.mxu0 0.0
  %320 = vmatpush.msra.mxu0 0.0
  %321 = vmatpush.msra.mxu0 0.0
  %322 = vmatpush.msra.mxu0 %v47
  %323 = vmatpush.msra.mxu0 %v45
  %324 = vmatpush.msra.mxu0 %v43
  %325 = vmatpush.msra.mxu0 %v41
  %326 = vmatmul.f32.gmra.mxu0 %v263
  %v327 = vpop.f32.mrf.mxu0
  %v328 = vadd.f32 %v261, %v327
  %329 = vmatmul.f32.gmra.mxu0 %v266
  %v330 = vpop.f32.mrf.mxu0
  %v331 = vadd.f32 %v261, %v330
  %332 = vmatmul.f32.gmra.mxu0 %v269
  %v333 = vpop.f32.mrf.mxu0
  %v334 = vadd.f32 %v261, %v333
  %335 = vmatmul.f32.gmra.mxu0 %v272
  %v336 = vpop.f32.mrf.mxu0
  %v337 = vadd.f32 %v261, %v336
  %338 = vmatmul.f32.gmra.mxu0 %v275
  %v339 = vpop.f32.mrf.mxu0
  %v340 = vadd.f32 %v261, %v339
  %341 = vmatmul.f32.gmra.mxu0 %v278
  %v342 = vpop.f32.mrf.mxu0
  %v343 = vadd.f32 %v261, %v342
  %344 = vmatmul.f32.gmra.mxu0 %v281
  %v345 = vpop.f32.mrf.mxu0
  %v346 = vadd.f32 %v261, %v345
  %347 = vmatmul.f32.gmra.mxu0 %v284
  %v348 = vpop.f32.mrf.mxu0
  %v349 = vadd.f32 %v261, %v348
  %350 = vmatmul.f32.gmra.mxu0 %v287
  %v351 = vpop.f32.mrf.mxu0
  %v352 = vadd.f32 %v261, %v351
  %353 = vmatmul.f32.gmra.mxu0 %v290
  %v354 = vpop.f32.mrf.mxu0
  %v355 = vadd.f32 %v261, %v354
  %356 = vmatmul.f32.gmra.mxu0 %v293
  %v357 = vpop.f32.mrf.mxu0
  %v358 = vadd.f32 %v261, %v357
  %359 = vmatmul.f32.gmra.mxu0 %v296
  %v360 = vpop.f32.mrf.mxu0
  %v361 = vadd.f32 %v261, %v360
  %362 = vmatmul.f32.gmra.mxu0 %v299
  %v363 = vpop.f32.mrf.mxu0
  %v364 = vadd.f32 %v261, %v363
  %365 = vmatmul.f32.gmra.mxu0 %v302
  %v366 = vpop.f32.mrf.mxu0
  %v367 = vadd.f32 %v261, %v366
  %368 = vmatmul.f32.gmra.mxu0 %v305
  %v369 = vpop.f32.mrf.mxu0
  %v370 = vadd.f32 %v261, %v369
  %371 = vmatmul.f32.gmra.mxu0 %v308
  %v372 = vpop.f32.mrf.mxu0
  %v373 = vadd.f32 %v261, %v372
  %374 = vdwg.mxu0
  %v375 = vmax.f32 %v328, 0.0
  %v376 = vmax.f32 %v331, 0.0
  %v377 = vmax.f32 %v334, 0.0
  %v378 = vmax.f32 %v337, 0.0
  %v379 = vmax.f32 %v340, 0.0
  %v380 = vmax.f32 %v343, 0.0
  %v381 = vmax.f32 %v346, 0.0
  %v382 = vmax.f32 %v349, 0.0
  %v383 = vmax.f32 %v352, 0.0
  %v384 = vmax.f32 %v355, 0.0
  %v385 = vmax.f32 %v358, 0.0
  %v386 = vmax.f32 %v361, 0.0
  %v387 = vmax.f32 %v364, 0.0
  %v388 = vmax.f32 %v367, 0.0
  %v389 = vmax.f32 %v370, 0.0
  %v390 = vmax.f32 %v373, 0.0
  %v391 = vperm.slane %v97, 2
  %v393 = vsel %vm229, %v259, 0
  %v396 = vsel %vm229, %v260, 0
  %398 = vmatpush.msra.mxu0 0.0
  %399 = vmatpush.msra.mxu0 0.0
  %400 = vmatpush.msra.mxu0 0.0
  %401 = vmatpush.msra.mxu0 0.0
  %402 = vmatpush.msra.mxu0 0.0
  %403 = vmatpush.msra.mxu0 0.0
  %404 = vmatpush.msra.mxu0 0.0
  %405 = vmatpush.msra.mxu0 0.0
  %406 = vmatpush.msra.mxu0 %v77
  %407 = vmatpush.msra.mxu0 %v73
  %408 = vmatpush.msra.mxu0 %v69
  %409 = vmatpush.msra.mxu0 %v65
  %410 = vmatpush.msra.mxu0 %v61
  %411 = vmatpush.msra.mxu0 %v57
  %412 = vmatpush.msra.mxu0 %v53
  %413 = vmatpush.msra.mxu0 %v49
  %414 = vmatmul.f32.gmra.mxu0 %v393
  %v415 = vpop.f32.mrf.mxu0
  %v416 = vadd.f32 %v391, %v415
  %417 = vmatmul.f32.gmra.mxu0 %v396
  %v418 = vpop.f32.mrf.mxu0
  %v419 = vadd.f32 %v391, %v418
  %420 = vdwg.mxu0
  %v421 = vmax.f32 %v416, 0.0
  %v422 = vmax.f32 %v419, 0.0
  %v423 = vperm.slane %v97, 6
  %v424 = vmul.f32 %v421, %v423
  %v425 = vmul.f32 %v422, %v423
  %v427 = vsel %vm229, %v424, 0
  %v430 = vsel %vm229, %v425, 0
  %v433 = vsel %vm229, %v375, 0
  %v436 = vsel %vm229, %v376, 0
  %v439 = vsel %vm229, %v377, 0
  %v442 = vsel %vm229, %v378, 0
  %v445 = vsel %vm229, %v379, 0
  %v448 = vsel %vm229, %v380, 0
  %v451 = vsel %vm229, %v381, 0
  %v454 = vsel %vm229, %v382, 0
  %v457 = vsel %vm229, %v383, 0
  %v460 = vsel %vm229, %v384, 0
  %v463 = vsel %vm229, %v385, 0
  %v466 = vsel %vm229, %v386, 0
  %v469 = vsel %vm229, %v387, 0
  %v472 = vsel %vm229, %v388, 0
  %v475 = vsel %vm229, %v389, 0
  %v478 = vsel %vm229, %v390, 0
  %480 = vmatpush.xpose.msra.mxu0 %v478
  %481 = vmatpush.xpose.msra.mxu0 %v475
  %482 = vmatpush.xpose.msra.mxu0 %v472
  %483 = vmatpush.xpose.msra.mxu0 %v469
  %484 = vmatpush.xpose.msra.mxu0 %v466
  %485 = vmatpush.xpose.msra.mxu0 %v463
  %486 = vmatpush.xpose.msra.mxu0 %v460
  %487 = vmatpush.xpose.msra.mxu0 %v457
  %488 = vmatpush.xpose.msra.mxu0 %v454
  %489 = vmatpush.xpose.msra.mxu0 %v451
  %490 = vmatpush.xpose.msra.mxu0 %v448
  %491 = vmatpush.xpose.msra.mxu0 %v445
  %492 = vmatpush.xpose.msra.mxu0 %v442
  %493 = vmatpush.xpose.msra.mxu0 %v439
  %494 = vmatpush.xpose.msra.mxu0 %v436
  %495 = vmatpush.xpose.msra.mxu0 %v433
  %496 = vmatmul.f32.gmra.mxu0 %v427
  %v497 = vpop.f32.mrf.mxu0
  %v498 = vadd.f32 0.0, %v497
  %499 = vmatmul.f32.gmra.mxu0 %v430
  %v500 = vpop.f32.mrf.mxu0
  %v501 = vadd.f32 0.0, %v500
  %502 = vdwg.mxu0
  %v503 = vlaneseq
  %v504 = vshrl.u32 %v503, 7
  %v505 = vadd.s32 %v504, 8
  %v506 = vlaneseq
  %v507 = vand.u32 %v506, 127
  %vm508 = vcmp.lt.s32.totalorder %v504, 6
  %vm509 = vcmp.lt.s32.totalorder %v505, 6
  %vm510 = vcmp.lt.s32.totalorder %v507, 64
  %vm511 = vmand %vm508, %vm510
  %vm512 = vmand %vm509, %vm510
  %vm513 = vcmp.ge.s32.totalorder %v504, 6
  %vm514 = vcmp.ge.s32.totalorder %v505, 6
  %vm515 = vcmp.lt.s32.totalorder %v504, 12
  %vm516 = vcmp.lt.s32.totalorder %v505, 12
  %vm517 = vmand %vm513, %vm515
  %vm518 = vmand %vm514, %vm516
  %vm519 = vcmp.ge.s32.totalorder %v507, 64
  %vm520 = vmand %vm517, %vm519
  %vm521 = vmand %vm518, %vm519
  %vm522 = vcmp.lt.s32.totalorder %v507, 128
  %vm523 = vmand %vm520, %vm522
  %vm524 = vmand %vm521, %vm522
  %vm525 = vmor %vm511, %vm523
  %vm526 = vmor %vm512, %vm524
  %v527 = vsel %vm525, %v498, -3.4028235e+38
  %v528 = vsel %vm526, %v501, -3.4028235e+38
  %529 = vmax.xlane.f32.xlu0 %v527
  %v530 = vpop.xlane.xlu0 %529
  %vm531 = vcmask 1043456
  %v532 = vsel %vm531, %v528, -inf
  %533 = vmax.xlane.f32.xlu0 %v532
  %v534 = vpop.xlane.xlu0 %533
  %v535 = vsub.f32 %v527, %v530
  %v536 = vsub.f32 %v528, %v534
  %v537 = vmul.f32 %v535, 1.442695
  %v538 = vpow.pop %v537
  %v539 = vmul.f32 %v536, 1.442695
  %v540 = vpow.pop %v539
  %541 = vadd.xlane.f32.xlu0 %v538
  %v542 = vpop.xlane.xlu0 %541
  %v543 = vsel %vm531, %v540, 0.0
  %544 = vadd.xlane.f32.xlu0 %v543
  %v545 = vpop.xlane.xlu0 %544
  %v546 = vrcp.pop %v542
  %v547 = vmul.f32 %v542, %v546
  %v548 = vsub.f32 1.0, %v547
  %v549 = vmul.f32 %v546, %v548
  %v550 = vadd.f32 %v546, %v549
  %vm551 = vweird.f32 %v542
  %vm552 = vweird.f32 %v546
  %vm553 = vmor %vm551, %vm552
  %v554 = vsel %vm553, %v546, %v550
  %v555 = vand.u32 2147483647, %v542
  %vm556 = vcmp.eq.f32.partialorder %v555, 8.507059e+37
  %v557 = vand.u32 %v542, 2147483648
  %v558 = vor.u32 1.1754944e-38, %v557
  %v559 = vsel %vm556, %v558, %v554
  %v560 = vmul.f32 %v538, %v559
  %v561 = vrcp.pop %v545
  %v562 = vmul.f32 %v545, %v561
  %v563 = vsub.f32 1.0, %v562
  %v564 = vmul.f32 %v561, %v563
  %v565 = vadd.f32 %v561, %v564
  %vm566 = vweird.f32 %v545
  %vm567 = vweird.f32 %v561
  %vm568 = vmor %vm566, %vm567
  %v569 = vsel %vm568, %v561, %v565
  %v570 = vand.u32 2147483647, %v545
  %vm571 = vcmp.eq.f32.partialorder %v570, 8.507059e+37
  %v572 = vand.u32 %v545, 2147483648
  %v573 = vor.u32 1.1754944e-38, %v572
  %v574 = vsel %vm571, %v573, %v569
  %v575 = vmul.f32 %v540, %v574
  %576 = vmatpush.msra.mxu0 %v227
  %577 = vmatpush.msra.mxu0 %v226
  %578 = vmatpush.msra.mxu0 %v225
  %579 = vmatpush.msra.mxu0 %v224
  %580 = vmatpush.msra.mxu0 %v223
  %581 = vmatpush.msra.mxu0 %v222
  %582 = vmatpush.msra.mxu0 %v221
  %583 = vmatpush.msra.mxu0 %v220
  %584 = vmatpush.msra.mxu0 %v219
  %585 = vmatpush.msra.mxu0 %v218
  %586 = vmatpush.msra.mxu0 %v217
  %587 = vmatpush.msra.mxu0 %v216
  %588 = vmatpush.msra.mxu0 %v215
  %589 = vmatpush.msra.mxu0 %v214
  %590 = vmatpush.msra.mxu0 %v213
  %591 = vmatpush.msra.mxu0 %v212
  %592 = vmatmul.f32.gmra.mxu0 %v560
  %v593 = vpop.f32.mrf.mxu0
  %v594 = vadd.f32 0.0, %v593
  %595 = vmatmul.f32.gmra.mxu0 %v575
  %v596 = vpop.f32.mrf.mxu0
  %v597 = vadd.f32 0.0, %v596
  %598 = vdwg.mxu0
  %603 = vrot.lane.b32.xlu0 %v41, 64
  %v604 = vpop.permute.xlu0 %603
  %605 = vrot.lane.b32.xlu0 %v43, 64
  %v606 = vpop.permute.xlu0 %605
  %607 = vrot.lane.b32.xlu0 %v45, 64
  %v608 = vpop.permute.xlu0 %607
  %609 = vrot.lane.b32.xlu0 %v47, 64
  %v610 = vpop.permute.xlu0 %609
  %616 = vrot.lane.b32.xlu0 %v261, 64
  %v617 = vpop.permute.xlu0 %616
  %v620 = vsel %vm98, %v594, 0
  %v623 = vsel %vm98, %v597, 0
  %625 = vmatpush.msra.mxu0 0.0
  %626 = vmatpush.msra.mxu0 0.0
  %627 = vmatpush.msra.mxu0 0.0
  %628 = vmatpush.msra.mxu0 0.0
  %629 = vmatpush.msra.mxu0 0.0
  %630 = vmatpush.msra.mxu0 0.0
  %631 = vmatpush.msra.mxu0 0.0
  %632 = vmatpush.msra.mxu0 0.0
  %633 = vmatpush.msra.mxu0 0.0
  %634 = vmatpush.msra.mxu0 0.0
  %635 = vmatpush.msra.mxu0 0.0
  %636 = vmatpush.msra.mxu0 0.0
  %637 = vmatpush.msra.mxu0 %v610
  %638 = vmatpush.msra.mxu0 %v608
  %639 = vmatpush.msra.mxu0 %v606
  %640 = vmatpush.msra.mxu0 %v604
  %641 = vmatmul.f32.gmra.mxu0 %v620
  %v642 = vpop.f32.mrf.mxu0
  %v643 = vadd.f32 %v617, %v642
  %644 = vmatmul.f32.gmra.mxu0 %v623
  %v645 = vpop.f32.mrf.mxu0
  %v646 = vadd.f32 %v617, %v645
  %647 = vdwg.mxu0
  %v648 = vmax.f32 %v643, 0.0
  %v649 = vmax.f32 %v646, 0.0
  %652 = vrot.lane.b32.xlu0 %v648, 64
  %v653 = vpop.permute.xlu0 %652
  %654 = vrot.lane.b32.xlu0 %v649, 64
  %v655 = vpop.permute.xlu0 %654
  %v658 = vmul.f32 %v421, %v653
  %v659 = vmul.f32 %v422, %v655
  %v660 = vperm.slane %v97, 3
  %663 = vrot.lane.b32.xlu0 %v658, 64
  %v664 = vpop.permute.xlu0 %663
  %665 = vrot.lane.b32.xlu0 %v659, 64
  %v666 = vpop.permute.xlu0 %665
  %v667 = vsel %vm229, %v664, 0
  %v669 = vsel %vm229, %v666, 0
  %671 = vmatpush.msra.mxu0 0.0
  %672 = vmatpush.msra.mxu0 0.0
  %673 = vmatpush.msra.mxu0 0.0
  %674 = vmatpush.msra.mxu0 0.0
  %675 = vmatpush.msra.mxu0 0.0
  %676 = vmatpush.msra.mxu0 0.0
  %677 = vmatpush.msra.mxu0 0.0
  %678 = vmatpush.msra.mxu0 0.0
  %679 = vmatpush.msra.mxu0 %v78
  %680 = vmatpush.msra.mxu0 %v74
  %681 = vmatpush.msra.mxu0 %v70
  %682 = vmatpush.msra.mxu0 %v66
  %683 = vmatpush.msra.mxu0 %v62
  %684 = vmatpush.msra.mxu0 %v58
  %685 = vmatpush.msra.mxu0 %v54
  %686 = vmatpush.msra.mxu0 %v50
  %687 = vmatmul.f32.gmra.mxu0 %v667
  %v688 = vpop.f32.mrf.mxu0
  %v689 = vadd.f32 %v660, %v688
  %690 = vmatmul.f32.gmra.mxu0 %v669
  %v691 = vpop.f32.mrf.mxu0
  %v692 = vadd.f32 %v660, %v691
  %693 = vdwg.mxu0
  %v694 = vmax.f32 %v689, 0.0
  %v695 = vmax.f32 %v692, 0.0
  %v696 = vmul.f32 %v694, %v423
  %v697 = vmul.f32 %v695, %v423
  %700 = vrot.lane.b32.xlu0 %v696, 64
  %v701 = vpop.permute.xlu0 %700
  %702 = vrot.lane.b32.xlu0 %v697, 64
  %v703 = vpop.permute.xlu0 %702
  %v704 = vsel %vm229, %v701, 0
  %v706 = vsel %vm229, %v703, 0
  %v709 = vsel %vm229, %v694, 0
  %v712 = vsel %vm229, %v695, 0
  %714 = vmatpush.xpose.msra.mxu0 0.0
  %715 = vmatpush.xpose.msra.mxu0 0.0
  %716 = vmatpush.xpose.msra.mxu0 0.0
  %717 = vmatpush.xpose.msra.mxu0 0.0
  %718 = vmatpush.xpose.msra.mxu0 0.0
  %719 = vmatpush.xpose.msra.mxu0 0.0
  %720 = vmatpush.xpose.msra.mxu0 0.0
  %721 = vmatpush.xpose.msra.mxu0 0.0
  %722 = vmatpush.xpose.msra.mxu0 0.0
  %723 = vmatpush.xpose.msra.mxu0 0.0
  %724 = vmatpush.xpose.msra.mxu0 0.0
  %725 = vmatpush.xpose.msra.mxu0 0.0
  %726 = vmatpush.xpose.msra.mxu0 0.0
  %727 = vmatpush.xpose.msra.mxu0 0.0
  %728 = vmatpush.xpose.msra.mxu0 %v712
  %729 = vmatpush.xpose.msra.mxu0 %v709
  %730 = vmatmul.f32.gmra.mxu0 %v704
  %v731 = vpop.f32.mrf.mxu0
  %v732 = vadd.f32 0.0, %v731
  %733 = vmatmul.f32.gmra.mxu0 %v706
  %v734 = vpop.f32.mrf.mxu0
  %v735 = vadd.f32 0.0, %v734
  %736 = vdwg.mxu0
  %vm737 = vcmp.lt.s32.totalorder %v507, 6
  %vm738 = vmand %vm508, %vm737
  %vm739 = vmand %vm509, %vm737
  %vm740 = vcmp.ge.s32.totalorder %v507, 6
  %vm741 = vmand %vm517, %vm740
  %vm742 = vmand %vm518, %vm740
  %vm743 = vcmp.lt.s32.totalorder %v507, 12
  %vm744 = vmand %vm741, %vm743
  %vm745 = vmand %vm742, %vm743
  %vm746 = vmor %vm738, %vm744
  %vm747 = vmor %vm739, %vm745
  %vm748 = vcmp.ne.s32.totalorder %v504, %v507
  %vm749 = vcmp.ne.s32.totalorder %v505, %v507
  %vm750 = vmand %vm746, %vm748
  %vm751 = vmand %vm747, %vm749
  %v752 = vsel %vm750, %v732, -3.4028235e+38
  %v753 = vsel %vm751, %v735, -3.4028235e+38
  %vm754 = vcmask 97280
  %v755 = vsel %vm754, %v752, -inf
  %756 = vmax.xlane.f32.xlu0 %v755
  %v757 = vpop.xlane.xlu0 %756
  %vm758 = vcmask 93184
  %v759 = vsel %vm758, %v753, -inf
  %760 = vmax.xlane.f32.xlu0 %v759
  %v761 = vpop.xlane.xlu0 %760
  %v762 = vsub.f32 %v752, %v757
  %v763 = vsub.f32 %v753, %v761
  %v764 = vmul.f32 %v762, 1.442695
  %v765 = vpow.pop %v764
  %v766 = vmul.f32 %v763, 1.442695
  %v767 = vpow.pop %v766
  %v768 = vsel %vm754, %v765, 0.0
  %769 = vadd.xlane.f32.xlu0 %v768
  %v770 = vpop.xlane.xlu0 %769
  %v771 = vsel %vm758, %v767, 0.0
  %772 = vadd.xlane.f32.xlu0 %v771
  %v773 = vpop.xlane.xlu0 %772
  %v774 = vrcp.pop %v770
  %v775 = vmul.f32 %v770, %v774
  %v776 = vsub.f32 1.0, %v775
  %v777 = vmul.f32 %v774, %v776
  %v778 = vadd.f32 %v774, %v777
  %vm779 = vweird.f32 %v770
  %vm780 = vweird.f32 %v774
  %vm781 = vmor %vm779, %vm780
  %v782 = vsel %vm781, %v774, %v778
  %v783 = vand.u32 2147483647, %v770
  %vm784 = vcmp.eq.f32.partialorder %v783, 8.507059e+37
  %v785 = vand.u32 %v770, 2147483648
  %v786 = vor.u32 1.1754944e-38, %v785
  %v787 = vsel %vm784, %v786, %v782
  %v788 = vmul.f32 %v765, %v787
  %v789 = vrcp.pop %v773
  %v790 = vmul.f32 %v773, %v789
  %v791 = vsub.f32 1.0, %v790
  %v792 = vmul.f32 %v789, %v791
  %v793 = vadd.f32 %v789, %v792
  %vm794 = vweird.f32 %v773
  %vm795 = vweird.f32 %v789
  %vm796 = vmor %vm794, %vm795
  %v797 = vsel %vm796, %v789, %v793
  %v798 = vand.u32 2147483647, %v773
  %vm799 = vcmp.eq.f32.partialorder %v798, 8.507059e+37
  %v800 = vand.u32 %v773, 2147483648
  %v801 = vor.u32 1.1754944e-38, %v800
  %v802 = vsel %vm799, %v801, %v797
  %v803 = vmul.f32 %v767, %v802
  %v806 = vsel %vm754, %v788, 0
  %v809 = vsel %vm754, %v803, 0
  %v811 = vsel %vm531, %v666, 0
  %813 = vmatpush.msra.mxu0 0.0
  %814 = vmatpush.msra.mxu0 0.0
  %815 = vmatpush.msra.mxu0 0.0
  %816 = vmatpush.msra.mxu0 0.0
  %817 = vmatpush.msra.mxu0 0.0
  %818 = vmatpush.msra.mxu0 0.0
  %819 = vmatpush.msra.mxu0 0.0
  %820 = vmatpush.msra.mxu0 0.0
  %821 = vmatpush.msra.mxu0 0.0
  %822 = vmatpush.msra.mxu0 0.0
  %823 = vmatpush.msra.mxu0 0.0
  %824 = vmatpush.msra.mxu0 0.0
  %825 = vmatpush.msra.mxu0 0.0
  %826 = vmatpush.msra.mxu0 0.0
  %827 = vmatpush.msra.mxu0 %v811
  %828 = vmatpush.msra.mxu0 %v664
  %829 = vmatmul.f32.gmra.mxu0 %v806
  %v830 = vpop.f32.mrf.mxu0
  %v831 = vadd.f32 0.0, %v830
  %832 = vmatmul.f32.gmra.mxu0 %v809
  %v833 = vpop.f32.mrf.mxu0
  %v834 = vadd.f32 0.0, %v833
  %835 = vdwg.mxu0
  %838 = vrot.lane.b32.xlu0 %v831, 64
  %v839 = vpop.permute.xlu0 %838
  %840 = vrot.lane.b32.xlu0 %v834, 64
  %v841 = vpop.permute.xlu0 %840
  %v844 = vmul.f32 %v658, %v839
  %v845 = vmul.f32 %v659, %v841
  %v846 = vperm.slane %v97, 4
  %849 = vrot.lane.b32.xlu0 %v844, 64
  %v850 = vpop.permute.xlu0 %849
  %851 = vrot.lane.b32.xlu0 %v845, 64
  %v852 = vpop.permute.xlu0 %851
  %v853 = vsel %vm229, %v850, 0
  %v855 = vsel %vm229, %v852, 0
  %857 = vmatpush.msra.mxu0 0.0
  %858 = vmatpush.msra.mxu0 0.0
  %859 = vmatpush.msra.mxu0 0.0
  %860 = vmatpush.msra.mxu0 0.0
  %861 = vmatpush.msra.mxu0 0.0
  %862 = vmatpush.msra.mxu0 0.0
  %863 = vmatpush.msra.mxu0 0.0
  %864 = vmatpush.msra.mxu0 0.0
  %865 = vmatpush.msra.mxu0 %v79
  %866 = vmatpush.msra.mxu0 %v75
  %867 = vmatpush.msra.mxu0 %v71
  %868 = vmatpush.msra.mxu0 %v67
  %869 = vmatpush.msra.mxu0 %v63
  %870 = vmatpush.msra.mxu0 %v59
  %871 = vmatpush.msra.mxu0 %v55
  %872 = vmatpush.msra.mxu0 %v51
  %873 = vmatmul.f32.gmra.mxu0 %v853
  %v874 = vpop.f32.mrf.mxu0
  %v875 = vadd.f32 %v846, %v874
  %876 = vmatmul.f32.gmra.mxu0 %v855
  %v877 = vpop.f32.mrf.mxu0
  %v878 = vadd.f32 %v846, %v877
  %879 = vdwg.mxu0
  %v880 = vmax.f32 %v875, 0.0
  %v881 = vmax.f32 %v878, 0.0
  %v882 = vperm.slane %v97, 5
  %883 = vmatpush.msra.mxu0 %v96
  %884 = vmatpush.msra.mxu0 %v95
  %885 = vmatpush.msra.mxu0 %v94
  %886 = vmatpush.msra.mxu0 %v93
  %887 = vmatpush.msra.mxu0 %v92
  %888 = vmatpush.msra.mxu0 %v91
  %889 = vmatpush.msra.mxu0 %v90
  %890 = vmatpush.msra.mxu0 %v89
  %891 = vmatpush.msra.mxu0 %v88
  %892 = vmatpush.msra.mxu0 %v87
  %893 = vmatpush.msra.mxu0 %v86
  %894 = vmatpush.msra.mxu0 %v85
  %895 = vmatpush.msra.mxu0 %v84
  %896 = vmatpush.msra.mxu0 %v83
  %897 = vmatpush.msra.mxu0 %v82
  %898 = vmatpush.msra.mxu0 %v81
  %899 = vmatmul.f32.gmra.mxu0 %v880
  %v900 = vpop.f32.mrf.mxu0
  %v901 = vadd.f32 %v882, %v900
  %902 = vmatmul.f32.gmra.mxu0 %v881
  %v903 = vpop.f32.mrf.mxu0
  %v904 = vadd.f32 %v882, %v903
  %905 = vdwg.mxu0
  %906 = vst [vmem:[%s6] sm:$0xff] %v901
  %907 = vst [vmem:[%s6 + $0x8] sm:$0xf] %v904
  // Predicated region
  $region26: #{forward.1} parent=0 // pred_check
    _
  $region27: #{forward.1} parent=0 // pred_check_branch
    %909 = sbr.rel (0) target = $region29
  $region28: #{forward.1} parent=0 // pred_region
    _
  $region29: #{forward.1} parent=0 // pred_fallthru
    _
  // Predicated region
  $region30: #{forward.1} parent=0 // pred_check
    _
  $region31: #{forward.1} parent=0 // pred_check_branch
    %911 = sbr.rel (0) target = $region33
  $region32: #{forward.1} parent=0 // pred_region
    _
  $region33: #{forward.1} parent=0 // pred_fallthru
    _

</llo_original>
